<compile_context>
chip_gen: v5e
topology: v5e:2x2
jax: 0.10.0
libtpu: 0.0.40
codegen_flags: <defaults>
</compile_context>

<pallas_src>
import jax
import jax.numpy as jnp
from jax.experimental import pallas as pl
from jax.experimental.pallas import tpu as pltpu

_LANE = 128
_BF16_SUBLANE = 16          # bf16 packs 16 rows per vreg sublane group
_MAX_TB = 2048              # fits easily in VMEM (<~10 MiB at H=256)
_SPLIT_MIN_B = 256          # above this, force >=2 tiles (v7x megacore)


def _round_up(x, m):
    return (x + m - 1) // m * m


def _actor_kernel(s_ref, w1_ref, b1_ref, w2_ref, b2_ref, wm_ref, bm_ref,
                  mean_ref):
    # fc1 + relu: cast state to bf16 in-kernel (cheap VPU op hidden under MXU),
    # f32 accumulation, f32 bias-add / relu on the VPU.
    s = s_ref[...].astype(jnp.bfloat16)
    h1 = jnp.dot(s, w1_ref[...], preferred_element_type=jnp.float32)
    h1 = jnp.maximum(h1 + b1_ref[...], 0.0)
    # fc2 + relu
    h2 = jnp.dot(h1.astype(jnp.bfloat16), w2_ref[...],
                 preferred_element_type=jnp.float32)
    h2 = jnp.maximum(h2 + b2_ref[...], 0.0)
    # mean head (lane-dense 128-wide output tile; wrapper slices to A)
    mean_ref[...] = (jnp.dot(h2.astype(jnp.bfloat16), wm_ref[...],
                             preferred_element_type=jnp.float32)
                     + bm_ref[...])


@jax.jit
def actor_forward(state, w1, b1, w2, b2, wm, bm, log_std):
    """Returns (action_mean (B, A) f32, action_std (A,) f32)."""
    B, S = state.shape
    H = w1.shape[1]
    A = wm.shape[1]

    H_p = _round_up(H, _LANE)
    A_p = _round_up(A, _LANE)

    # Batch tiling: one tile for small batches; >=2 tiles above _SPLIT_MIN_B so
    # both v7x TensorCores are used; cap at _MAX_TB for very large batches.
    if B > _SPLIT_MIN_B:
        TB = min(_MAX_TB, _round_up(pl.cdiv(B, 2), _BF16_SUBLANE))
    else:
        TB = min(_MAX_TB, _round_up(B, _BF16_SUBLANE))
    B_p = _round_up(B, TB)
    n_tiles = B_p // TB

    # State stays f32 at its real width; only row-pad when the last tile is
    # ragged (no-op / skipped entirely when B is already tile-aligned).
    state_in = state if B_p == B else jnp.pad(state, ((0, B_p - B), (0, 0)))

    def pad2(x, rows, cols):
        return jnp.pad(x, ((0, rows - x.shape[0]), (0, cols - x.shape[1])))

    # bf16 weights (one-time, batch-independent); biases stay f32.
    w1_p = pad2(w1, S, H_p).astype(jnp.bfloat16)
    w2_p = pad2(w2, H_p, H_p).astype(jnp.bfloat16)
    wm_p = pad2(wm, H_p, A_p).astype(jnp.bfloat16)
    b1_p = pad2(b1.reshape(1, -1), 1, H_p)
    b2_p = pad2(b2.reshape(1, -1), 1, H_p)
    bm_p = pad2(bm.reshape(1, -1), 1, A_p)

    def resident(shape):
        # VMEM-resident operand: same block for every grid step.
        return pl.BlockSpec(shape, lambda i: (0, 0))

    flops = 2 * B_p * (S * H_p + H_p * H_p + H_p * A_p)
    bytes_accessed = (
        B_p * S * 4                                             # f32 state
        + (w1_p.size + w2_p.size + wm_p.size) * 2               # bf16 weights
        + (b1_p.size + b2_p.size + bm_p.size) * 4               # f32 biases
        + B_p * A_p * 4)                                        # f32 output

    mean_p = pl.pallas_call(
        _actor_kernel,
        out_shape=jax.ShapeDtypeStruct((B_p, A_p), jnp.float32),
        grid_spec=pltpu.PrefetchScalarGridSpec(
            num_scalar_prefetch=0,
            grid=(n_tiles,),
            in_specs=[
                pl.BlockSpec((TB, S), lambda i: (i, 0)),        # state tile
                resident((S, H_p)), resident((1, H_p)),         # fc1
                resident((H_p, H_p)), resident((1, H_p)),       # fc2
                resident((H_p, A_p)), resident((1, A_p)),       # mean head
            ],
            out_specs=pl.BlockSpec((TB, A_p), lambda i: (i, 0)),
        ),
        compiler_params=pltpu.CompilerParams(
            dimension_semantics=("parallel",),
            vmem_limit_bytes=32 * 1024 * 1024),
        cost_estimate=pl.CostEstimate(
            flops=flops, transcendentals=0, bytes_accessed=bytes_accessed),
    )(state_in, w1_p, b1_p, w2_p, b2_p, wm_p, bm_p)

    # TODO(synk): the [:B, :A] slice + f32 writeback could be deferred /
    # emitted in bf16 if downstream consumers tolerate it (cuts ~2/3 of the
    # kernel's HBM writeback); kept f32+(B, A) to match the module's output.
    action_mean = mean_p[:B, :A]
    # std is batch-independent (exp on A elements) -> keep it out of the kernel.
    action_std = jnp.exp(log_std.reshape(-1))
    return action_mean, action_std


def init_actor_params(key, state_dim, action_dim, hidden_size=256):
    """Synthetic init mimicking nn.Linear default (uniform +-1/sqrt(fan_in)).

    Weights are stored as (in_features, out_features), i.e. the transpose of
    PyTorch's nn.Linear weight, so the kernel computes y = x @ W + b.
    """
    ks = jax.random.split(key, 6)

    def linear(kw, kb, fan_in, fan_out):
        bound = 1.0 / jnp.sqrt(fan_in)
        w = jax.random.uniform(kw, (fan_in, fan_out), jnp.float32, -bound, bound)
        b = jax.random.uniform(kb, (fan_out,), jnp.float32, -bound, bound)
        return w, b

    w1, b1 = linear(ks[0], ks[1], state_dim, hidden_size)
    w2, b2 = linear(ks[2], ks[3], hidden_size, hidden_size)
    wm, bm = linear(ks[4], ks[5], hidden_size, action_dim)
    log_std = jnp.zeros((action_dim,), jnp.float32)
    return w1, b1, w2, b2, wm, bm, log_std


def _reference(state, w1, b1, w2, b2, wm, bm, log_std):
    x = jnp.maximum(state @ w1 + b1, 0.0)
    x = jnp.maximum(x @ w2 + b2, 0.0)
    return x @ wm + bm, jnp.exp(log_std)


if __name__ == "__main__":
    # Small shapes consistent with the module: batch=8, state_dim=16,
    # hidden_size=32, action_dim=4.
    B, S, H, A = 8, 16, 32, 4

    key = jax.random.PRNGKey(0)
    k_state, k_params = jax.random.split(key)
    state = jax.random.normal(k_state, (B, S), jnp.float32)
    params = init_actor_params(k_params, S, A, hidden_size=H)

    mean, std = actor_forward(state, *params)
    jax.block_until_ready((mean, std))

    ref_mean, ref_std = _reference(state, *params)
    assert mean.shape == (B, A) and std.shape == (A,)
    # Kernel uses bf16 MXU operands with f32 accumulation -> loose tolerance
    # versus the f32 reference.
    assert jnp.allclose(mean, ref_mean, atol=2e-2, rtol=2e-2), (
        float(jnp.max(jnp.abs(mean - ref_mean))))
    assert jnp.allclose(std, ref_std, atol=1e-6, rtol=1e-6)

    print("KERNEL_OK")
</pallas_src>

<mosaic_0001>
module attributes {stable_mosaic.version = 11 : i64} {
  func.func @_actor_kernel(%arg0: i32, %arg1: memref<16x16xf32, #tpu.memory_space<vmem>>, %arg2: memref<16x128xbf16, #tpu.memory_space<vmem>>, %arg3: memref<1x128xf32, #tpu.memory_space<vmem>>, %arg4: memref<128x128xbf16, #tpu.memory_space<vmem>>, %arg5: memref<1x128xf32, #tpu.memory_space<vmem>>, %arg6: memref<128x128xbf16, #tpu.memory_space<vmem>>, %arg7: memref<1x128xf32, #tpu.memory_space<vmem>>, %arg8: memref<16x128xf32, #tpu.memory_space<vmem>>) attributes {dimension_semantics = [#tpu.dimension_semantics<parallel>], iteration_bounds = array<i64: 1>, scalar_prefetch = 0 : i64, scratch_operands = 0 : i64, tpu.core_type = #tpu.core_type<tc>, window_params = [{transform_indices = @transform_0, window_bounds = array<i64: 16, 16>}, {pipeline_mode = #tpu.pipeline_mode<synchronous>, transform_indices = @transform_1, window_bounds = array<i64: 16, 128>}, {pipeline_mode = #tpu.pipeline_mode<synchronous>, transform_indices = @transform_2, window_bounds = array<i64: 1, 128>}, {pipeline_mode = #tpu.pipeline_mode<synchronous>, transform_indices = @transform_3, window_bounds = array<i64: 128, 128>}, {pipeline_mode = #tpu.pipeline_mode<synchronous>, transform_indices = @transform_4, window_bounds = array<i64: 1, 128>}, {pipeline_mode = #tpu.pipeline_mode<synchronous>, transform_indices = @transform_5, window_bounds = array<i64: 128, 128>}, {pipeline_mode = #tpu.pipeline_mode<synchronous>, transform_indices = @transform_6, window_bounds = array<i64: 1, 128>}, {transform_indices = @transform_7, window_bounds = array<i64: 16, 128>}]} {
    %c0 = arith.constant 0 : index
    %c0_0 = arith.constant 0 : index
    %0 = vector.load %arg1[%c0, %c0_0] : memref<16x16xf32, #tpu.memory_space<vmem>>, vector<16x16xf32>
    %1 = arith.truncf %0 : vector<16x16xf32> to vector<16x16xbf16>
    %c0_1 = arith.constant 0 : index
    %c0_2 = arith.constant 0 : index
    %2 = vector.load %arg2[%c0_1, %c0_2] : memref<16x128xbf16, #tpu.memory_space<vmem>>, vector<16x128xbf16>
    %cst = arith.constant dense<0.000000e+00> : vector<16x128xf32>
    %3 = tpu.matmul %1, %2, %cst {dimension_numbers = #tpu.dot_dimension_numbers<[1], [0], [0], [1], [0, 0, 1, 1], [], []>} : vector<16x16xbf16>, vector<16x128xbf16>, vector<16x128xf32> -> vector<16x128xf32>
    %c0_3 = arith.constant 0 : index
    %c0_4 = arith.constant 0 : index
    %4 = vector.load %arg3[%c0_3, %c0_4] : memref<1x128xf32, #tpu.memory_space<vmem>>, vector<1x128xf32>
    %5 = vector.broadcast %4 : vector<1x128xf32> to vector<16x128xf32>
    %6 = arith.addf %3, %5 : vector<16x128xf32>
    %cst_5 = arith.constant 0.000000e+00 : f32
    %7 = vector.broadcast %cst_5 : f32 to vector<16x128xf32>
    %8 = arith.maximumf %6, %7 : vector<16x128xf32>
    %9 = arith.truncf %8 : vector<16x128xf32> to vector<16x128xbf16>
    %c0_6 = arith.constant 0 : index
    %c0_7 = arith.constant 0 : index
    %10 = vector.load %arg4[%c0_6, %c0_7] : memref<128x128xbf16, #tpu.memory_space<vmem>>, vector<128x128xbf16>
    %cst_8 = arith.constant dense<0.000000e+00> : vector<16x128xf32>
    %11 = tpu.matmul %9, %10, %cst_8 {dimension_numbers = #tpu.dot_dimension_numbers<[1], [0], [0], [1], [0, 0, 1, 1], [], []>} : vector<16x128xbf16>, vector<128x128xbf16>, vector<16x128xf32> -> vector<16x128xf32>
    %c0_9 = arith.constant 0 : index
    %c0_10 = arith.constant 0 : index
    %12 = vector.load %arg5[%c0_9, %c0_10] : memref<1x128xf32, #tpu.memory_space<vmem>>, vector<1x128xf32>
    %13 = vector.broadcast %12 : vector<1x128xf32> to vector<16x128xf32>
    %14 = arith.addf %11, %13 : vector<16x128xf32>
    %cst_11 = arith.constant 0.000000e+00 : f32
    %15 = vector.broadcast %cst_11 : f32 to vector<16x128xf32>
    %16 = arith.maximumf %14, %15 : vector<16x128xf32>
    %17 = arith.truncf %16 : vector<16x128xf32> to vector<16x128xbf16>
    %c0_12 = arith.constant 0 : index
    %c0_13 = arith.constant 0 : index
    %18 = vector.load %arg6[%c0_12, %c0_13] : memref<128x128xbf16, #tpu.memory_space<vmem>>, vector<128x128xbf16>
    %cst_14 = arith.constant dense<0.000000e+00> : vector<16x128xf32>
    %19 = tpu.matmul %17, %18, %cst_14 {dimension_numbers = #tpu.dot_dimension_numbers<[1], [0], [0], [1], [0, 0, 1, 1], [], []>} : vector<16x128xbf16>, vector<128x128xbf16>, vector<16x128xf32> -> vector<16x128xf32>
    %c0_15 = arith.constant 0 : index
    %c0_16 = arith.constant 0 : index
    %20 = vector.load %arg7[%c0_15, %c0_16] : memref<1x128xf32, #tpu.memory_space<vmem>>, vector<1x128xf32>
    %21 = vector.broadcast %20 : vector<1x128xf32> to vector<16x128xf32>
    %22 = arith.addf %19, %21 : vector<16x128xf32>
    %c0_17 = arith.constant 0 : index
    %c0_18 = arith.constant 0 : index
    %23 = vector.load %arg8[%c0_17, %c0_18] : memref<16x128xf32, #tpu.memory_space<vmem>>, vector<16x128xf32>
    tpu.vector_store %arg8[%c0_17, %c0_18], %22 {strides = array<i32>} : memref<16x128xf32, #tpu.memory_space<vmem>>, vector<16x128xf32>,
    return
  }
  func.func @transform_0(%arg0: i32) -> (i32, i32) {
    %c0_i32 = arith.constant 0 : i32
    %c0_i32_0 = arith.constant 0 : i32
    return %arg0, %c0_i32 : i32, i32
  }
  func.func @transform_1(%arg0: i32) -> (i32, i32) {
    %c0_i32 = arith.constant 0 : i32
    %c0_i32_0 = arith.constant 0 : i32
    %c0_i32_1 = arith.constant 0 : i32
    return %c0_i32, %c0_i32_0 : i32, i32
  }
  func.func @transform_2(%arg0: i32) -> (i32, i32) {
    %c0_i32 = arith.constant 0 : i32
    %c0_i32_0 = arith.constant 0 : i32
    %c0_i32_1 = arith.constant 0 : i32
    return %c0_i32, %c0_i32_0 : i32, i32
  }
  func.func @transform_3(%arg0: i32) -> (i32, i32) {
    %c0_i32 = arith.constant 0 : i32
    %c0_i32_0 = arith.constant 0 : i32
    %c0_i32_1 = arith.constant 0 : i32
    return %c0_i32, %c0_i32_0 : i32, i32
  }
  func.func @transform_4(%arg0: i32) -> (i32, i32) {
    %c0_i32 = arith.constant 0 : i32
    %c0_i32_0 = arith.constant 0 : i32
    %c0_i32_1 = arith.constant 0 : i32
    return %c0_i32, %c0_i32_0 : i32, i32
  }
  func.func @transform_5(%arg0: i32) -> (i32, i32) {
    %c0_i32 = arith.constant 0 : i32
    %c0_i32_0 = arith.constant 0 : i32
    %c0_i32_1 = arith.constant 0 : i32
    return %c0_i32, %c0_i32_0 : i32, i32
  }
  func.func @transform_6(%arg0: i32) -> (i32, i32) {
    %c0_i32 = arith.constant 0 : i32
    %c0_i32_0 = arith.constant 0 : i32
    %c0_i32_1 = arith.constant 0 : i32
    return %c0_i32, %c0_i32_0 : i32, i32
  }
  func.func @transform_7(%arg0: i32) -> (i32, i32) {
    %c0_i32 = arith.constant 0 : i32
    %c0_i32_0 = arith.constant 0 : i32
    return %arg0, %c0_i32 : i32, i32
  }
}

</mosaic_0001>

<llo_original>
// kernel: actor_forward.1
$region0: #{actor_forward.1}
  #allocation0 [shape = 'u32[]', space=smem, size = 0x4, offset = 0x4, fixed_abs, tag = 'smem constant byte address 0x4 - core index']
  #allocation1 [shape = 'u32[72,128]{1,0:T(1,128)}', space=vmem, size = 0x9000, scoped, tag = 'internal scratch']
  %s0 = inlined_call_operand.vmem [shape: f32[16,16], index: 0, kind: input, shape index: {}]
  %s1 = inlined_call_operand.vmem [shape: bf16[16,128], index: 1, kind: input, shape index: {}]
  %s2 = inlined_call_operand.vmem [shape: f32[1,128], index: 2, kind: input, shape index: {}]
  %s3 = inlined_call_operand.vmem [shape: bf16[128,128], index: 3, kind: input, shape index: {}]
  %s4 = inlined_call_operand.vmem [shape: f32[1,128], index: 4, kind: input, shape index: {}]
  %s5 = inlined_call_operand.vmem [shape: bf16[128,128], index: 5, kind: input, shape index: {}]
  %s6 = inlined_call_operand.vmem [shape: f32[1,128], index: 6, kind: input, shape index: {}]
  %s7 = inlined_call_operand.vmem [shape: f32[16,128], index: 7, kind: output, shape index: {}]
  %s8 = sld [smem:[#allocation0]]
  $region38: #{actor_forward.1} parent=0
    _
  %s10 = ssub.s32 1, %s8
  %s11 = scalar_select 0, %s10, %s8
  // Predicated region
  $region2: #{actor_forward.1} parent=0 // pred_check
    _
  $region3: #{actor_forward.1} parent=0 // pred_check_branch
    %13 = sbr.rel (0) target = $region5
  $region4: #{actor_forward.1} parent=0 // pred_region
    _
  $region5: #{actor_forward.1} parent=0 // pred_fallthru
    _
  // Predicated region
  $region6: #{actor_forward.1} parent=0 // pred_check
    _
  $region7: #{actor_forward.1} parent=0 // pred_check_branch
    %15 = sbr.rel (0) target = $region9
  $region8: #{actor_forward.1} parent=0 // pred_region
    _
  $region9: #{actor_forward.1} parent=0 // pred_fallthru
    _
  // Predicated region
  $region10: #{actor_forward.1} parent=0 // pred_check
    _
  $region11: #{actor_forward.1} parent=0 // pred_check_branch
    %17 = sbr.rel (0) target = $region13
  $region12: #{actor_forward.1} parent=0 // pred_region
    _
  $region13: #{actor_forward.1} parent=0 // pred_fallthru
    _
  // Predicated region
  $region14: #{actor_forward.1} parent=0 // pred_check
    _
  $region15: #{actor_forward.1} parent=0 // pred_check_branch
    %19 = sbr.rel (0) target = $region17
  $region16: #{actor_forward.1} parent=0 // pred_region
    _
  $region17: #{actor_forward.1} parent=0 // pred_fallthru
    _
  // Predicated region
  $region18: #{actor_forward.1} parent=0 // pred_check
    _
  $region19: #{actor_forward.1} parent=0 // pred_check_branch
    %21 = sbr.rel (0) target = $region21
  $region20: #{actor_forward.1} parent=0 // pred_region
    _
  $region21: #{actor_forward.1} parent=0 // pred_fallthru
    _
  // Predicated region
  $region22: #{actor_forward.1} parent=0 // pred_check
    _
  $region23: #{actor_forward.1} parent=0 // pred_check_branch
    %23 = sbr.rel (0) target = $region25
  $region24: #{actor_forward.1} parent=0 // pred_region
    _
  $region25: #{actor_forward.1} parent=0 // pred_fallthru
    _
  // Predicated region
  $region26: #{actor_forward.1} parent=0 // pred_check
    _
  $region27: #{actor_forward.1} parent=0 // pred_check_branch
    %25 = sbr.rel (0) target = $region29
  $region28: #{actor_forward.1} parent=0 // pred_region
    _
  $region29: #{actor_forward.1} parent=0 // pred_fallthru
    _
  %v27 = vld [vmem:[%s0] sm:$0xff]
  %v28 = vld [vmem:[%s0 + $0x8] sm:$0xff]
  %v29 = vpack.c.bf16 %v28, %v27
  %v30 = vld [vmem:[%s1] sm:$0xf]
  %v31 = vld [vmem:[%s1 + $0x4] sm:$0xf]
  %v32 = vld [vmem:[%s2] sm:$0x1]
  %v34 = vperm.slane %v32, 0
  %v38 = vunpack.c.l.b16 %v30
  %v39 = vunpack.c.l.b16 %v31
  %v40 = vpack.c.b16 %v39, %v38
  %vm42 = vcmask 130048
  %v44 = vsel %vm42, %v29, 0
  %46 = vmatpush.bf16.msra.mxu0 0
  %47 = vmatpush.bf16.msra.mxu0 0
  %48 = vmatpush.bf16.msra.mxu0 0
  %49 = vmatpush.bf16.msra.mxu0 0
  %50 = vmatpush.bf16.msra.mxu0 0
  %51 = vmatpush.bf16.msra.mxu0 0
  %52 = vmatpush.bf16.msra.mxu0 0
  %53 = vmatpush.bf16.msra.mxu0 %v40
  %54 = vmatmul.bf16.gmra.mxu0 %v44
  %v55 = vpop.f32.mrf.mxu0
  %v56 = vadd.f32 %v34, %v55
  %v57 = vpop.f32.mrf.mxu0
  %v58 = vadd.f32 %v34, %v57
  %59 = vdwg.mxu0
  %v60 = vmax.f32 %v56, 0.0
  %v61 = vmax.f32 %v58, 0.0
  %v62 = vpack.c.bf16 %v61, %v60
  %v63 = vld [vmem:[%s3] sm:$0xf]
  %v64 = vld [vmem:[%s3 + $0x4] sm:$0xf]
  %v65 = vld [vmem:[%s3 + $0x8] sm:$0xf]
  %v66 = vld [vmem:[%s3 + $0xc] sm:$0xf]
  %v67 = vld [vmem:[%s3 + $0x10] sm:$0xf]
  %v68 = vld [vmem:[%s3 + $0x14] sm:$0xf]
  %v69 = vld [vmem:[%s3 + $0x18] sm:$0xf]
  %v70 = vld [vmem:[%s3 + $0x1c] sm:$0xf]
  %v71 = vld [vmem:[%s3 + $0x20] sm:$0xf]
  %v72 = vld [vmem:[%s3 + $0x24] sm:$0xf]
  %v73 = vld [vmem:[%s3 + $0x28] sm:$0xf]
  %v74 = vld [vmem:[%s3 + $0x2c] sm:$0xf]
  %v75 = vld [vmem:[%s3 + $0x30] sm:$0xf]
  %v76 = vld [vmem:[%s3 + $0x34] sm:$0xf]
  %v77 = vld [vmem:[%s3 + $0x38] sm:$0xf]
  %v78 = vld [vmem:[%s3 + $0x3c] sm:$0xf]
  %v79 = vld [vmem:[%s4] sm:$0x1]
  %v81 = vperm.slane %v79, 0
  %v99 = vunpack.c.l.b16 %v63
  %v100 = vunpack.c.l.b16 %v64
  %v101 = vunpack.c.l.b16 %v65
  %v102 = vunpack.c.l.b16 %v66
  %v103 = vunpack.c.l.b16 %v67
  %v104 = vunpack.c.l.b16 %v68
  %v105 = vunpack.c.l.b16 %v69
  %v106 = vunpack.c.l.b16 %v70
  %v107 = vunpack.c.l.b16 %v71
  %v108 = vunpack.c.l.b16 %v72
  %v109 = vunpack.c.l.b16 %v73
  %v110 = vunpack.c.l.b16 %v74
  %v111 = vunpack.c.l.b16 %v75
  %v112 = vunpack.c.l.b16 %v76
  %v113 = vunpack.c.l.b16 %v77
  %v114 = vunpack.c.l.b16 %v78
  %v115 = vpack.c.b16 %v100, %v99
  %v116 = vpack.c.b16 %v102, %v101
  %v117 = vpack.c.b16 %v104, %v103
  %v118 = vpack.c.b16 %v106, %v105
  %v119 = vpack.c.b16 %v108, %v107
  %v120 = vpack.c.b16 %v110, %v109
  %v121 = vpack.c.b16 %v112, %v111
  %v122 = vpack.c.b16 %v114, %v113
  %131 = vmatpush.bf16.msra.mxu0 %v122
  %132 = vmatpush.bf16.msra.mxu0 %v121
  %133 = vmatpush.bf16.msra.mxu0 %v120
  %134 = vmatpush.bf16.msra.mxu0 %v119
  %135 = vmatpush.bf16.msra.mxu0 %v118
  %136 = vmatpush.bf16.msra.mxu0 %v117
  %137 = vmatpush.bf16.msra.mxu0 %v116
  %138 = vmatpush.bf16.msra.mxu0 %v115
  %139 = vmatmul.bf16.gmra.mxu0 %v62
  %v140 = vpop.f32.mrf.mxu0
  %v141 = vadd.f32 %v81, %v140
  %v142 = vpop.f32.mrf.mxu0
  %v143 = vadd.f32 %v81, %v142
  %144 = vdwg.mxu0
  %v145 = vmax.f32 %v141, 0.0
  %v146 = vmax.f32 %v143, 0.0
  %v147 = vpack.c.bf16 %v146, %v145
  %v148 = vld [vmem:[%s5] sm:$0xf]
  %v149 = vld [vmem:[%s5 + $0x4] sm:$0xf]
  %v150 = vld [vmem:[%s5 + $0x8] sm:$0xf]
  %v151 = vld [vmem:[%s5 + $0xc] sm:$0xf]
  %v152 = vld [vmem:[%s5 + $0x10] sm:$0xf]
  %v153 = vld [vmem:[%s5 + $0x14] sm:$0xf]
  %v154 = vld [vmem:[%s5 + $0x18] sm:$0xf]
  %v155 = vld [vmem:[%s5 + $0x1c] sm:$0xf]
  %v156 = vld [vmem:[%s5 + $0x20] sm:$0xf]
  %v157 = vld [vmem:[%s5 + $0x24] sm:$0xf]
  %v158 = vld [vmem:[%s5 + $0x28] sm:$0xf]
  %v159 = vld [vmem:[%s5 + $0x2c] sm:$0xf]
  %v160 = vld [vmem:[%s5 + $0x30] sm:$0xf]
  %v161 = vld [vmem:[%s5 + $0x34] sm:$0xf]
  %v162 = vld [vmem:[%s5 + $0x38] sm:$0xf]
  %v163 = vld [vmem:[%s5 + $0x3c] sm:$0xf]
  %v164 = vld [vmem:[%s6] sm:$0x1]
  %v166 = vperm.slane %v164, 0
  %v184 = vunpack.c.l.b16 %v148
  %v185 = vunpack.c.l.b16 %v149
  %v186 = vunpack.c.l.b16 %v150
  %v187 = vunpack.c.l.b16 %v151
  %v188 = vunpack.c.l.b16 %v152
  %v189 = vunpack.c.l.b16 %v153
  %v190 = vunpack.c.l.b16 %v154
  %v191 = vunpack.c.l.b16 %v155
  %v192 = vunpack.c.l.b16 %v156
  %v193 = vunpack.c.l.b16 %v157
  %v194 = vunpack.c.l.b16 %v158
  %v195 = vunpack.c.l.b16 %v159
  %v196 = vunpack.c.l.b16 %v160
  %v197 = vunpack.c.l.b16 %v161
  %v198 = vunpack.c.l.b16 %v162
  %v199 = vunpack.c.l.b16 %v163
  %v200 = vpack.c.b16 %v185, %v184
  %v201 = vpack.c.b16 %v187, %v186
  %v202 = vpack.c.b16 %v189, %v188
  %v203 = vpack.c.b16 %v191, %v190
  %v204 = vpack.c.b16 %v193, %v192
  %v205 = vpack.c.b16 %v195, %v194
  %v206 = vpack.c.b16 %v197, %v196
  %v207 = vpack.c.b16 %v199, %v198
  %216 = vmatpush.bf16.msra.mxu0 %v207
  %217 = vmatpush.bf16.msra.mxu0 %v206
  %218 = vmatpush.bf16.msra.mxu0 %v205
  %219 = vmatpush.bf16.msra.mxu0 %v204
  %220 = vmatpush.bf16.msra.mxu0 %v203
  %221 = vmatpush.bf16.msra.mxu0 %v202
  %222 = vmatpush.bf16.msra.mxu0 %v201
  %223 = vmatpush.bf16.msra.mxu0 %v200
  %224 = vmatmul.bf16.gmra.mxu0 %v147
  %v225 = vpop.f32.mrf.mxu0
  %v226 = vadd.f32 %v166, %v225
  %v227 = vpop.f32.mrf.mxu0
  %v228 = vadd.f32 %v166, %v227
  %229 = vdwg.mxu0
  %230 = vst [vmem:[%s7] sm:$0xff] %v226
  %231 = vst [vmem:[%s7 + $0x8] sm:$0xff] %v228
  // Predicated region
  $region30: #{actor_forward.1} parent=0 // pred_check
    _
  $region31: #{actor_forward.1} parent=0 // pred_check_branch
    %233 = sbr.rel (0) target = $region33
  $region32: #{actor_forward.1} parent=0 // pred_region
    _
  $region33: #{actor_forward.1} parent=0 // pred_fallthru
    _
  // Predicated region
  $region34: #{actor_forward.1} parent=0 // pred_check
    _
  $region35: #{actor_forward.1} parent=0 // pred_check_branch
    %235 = sbr.rel (0) target = $region37
  $region36: #{actor_forward.1} parent=0 // pred_region
    _
  $region37: #{actor_forward.1} parent=0 // pred_fallthru
    _

</llo_original>
